<compile_context>
chip_gen: v7x
topology: tpu7x:2x2x1
jax: 0.10.0
libtpu: 0.0.40
codegen_flags: <defaults>
</compile_context>

<pallas_src>
import math
from functools import partial

import jax
import jax.numpy as jnp
from jax import lax
from jax.experimental import pallas as pl
from jax.experimental.pallas import tpu as pltpu

EPS = 1e-6
NEG_INF = -1e9
MATMUL_DTYPE = jnp.bfloat16   # MXU operand dtype (f32 accumulation everywhere)


# ---------------------------------------------------------------------------
# In-kernel helpers (pure functions on VMEM values)
# ---------------------------------------------------------------------------
def _norm(x, alpha, bias):
    """alpha * (x - mean) / (unbiased_std + eps) + bias, over the last dim."""
    d = x.shape[-1]
    mean = jnp.mean(x, axis=-1, keepdims=True)
    c = x - mean
    var_unbiased = jnp.sum(c * c, axis=-1, keepdims=True) * (1.0 / (d - 1))
    inv = pl.reciprocal(jnp.sqrt(var_unbiased) + EPS)      # exact; EUP path
    return alpha * (c * inv) + bias


def _mha_core(q, k, v, mask2d, nhead, scale):
    """Per-head scaled-dot-product attention; all heads of one batch per call.

    q: (Sq, D), k/v: (Sk, D), mask2d: (Sq, Sk) or (1, Sk).  Returns (Sq, D).
    """
    D = q.shape[-1]
    dk = D // nhead
    outs = []
    for h in range(nhead):                      # static unroll over heads
        sl = slice(h * dk, (h + 1) * dk)
        qh = q[:, sl].astype(MATMUL_DTYPE)
        kh = k[:, sl].astype(MATMUL_DTYPE)
        vh = v[:, sl].astype(MATMUL_DTYPE)
        # Contract last dims directly (no explicit k.T materialization).
        s = lax.dot_general(qh, kh, (((1,), (1,)), ((), ())),
                            preferred_element_type=jnp.float32) * scale
        s = jnp.where(mask2d == 0, NEG_INF, s)  # masked_fill(mask==0, -1e9)
        s = s - jnp.max(s, axis=-1, keepdims=True)
        p = jnp.exp(s)
        p = p * pl.reciprocal(jnp.sum(p, axis=-1, keepdims=True), approx=True)
        outs.append(jnp.dot(p.astype(MATMUL_DTYPE), vh,
                            preferred_element_type=jnp.float32))
    return jnp.concatenate(outs, axis=-1)       # (Sq, D), lane-dense


# ---------------------------------------------------------------------------
# Kernel 1: norm1 + fused QKV + self-attention + out-proj + residual
# ---------------------------------------------------------------------------
def self_attn_block_kernel(x_ref, mask_ref, a_ref, nb_ref,
                           wqkv_ref, bqkv_ref, wo_ref, bo_ref, o_ref,
                           *, nhead, scale):
    x = x_ref[0]                                           # (S, D) f32
    D = x.shape[-1]
    x2 = _norm(x, a_ref[...], nb_ref[...])
    qkv = jnp.dot(x2.astype(MATMUL_DTYPE), wqkv_ref[...],
                  preferred_element_type=jnp.float32) + bqkv_ref[...]
    q, k, v = qkv[:, :D], qkv[:, D:2 * D], qkv[:, 2 * D:]
    attn = _mha_core(q, k, v, mask_ref[0], nhead, scale)   # (S, D)
    out = jnp.dot(attn.astype(MATMUL_DTYPE), wo_ref[...],
                  preferred_element_type=jnp.float32) + bo_ref[...]
    o_ref[0] = (x + out).astype(o_ref.dtype)               # fused residual


# ---------------------------------------------------------------------------
# Kernel 2: norm2 + Q proj + fused KV proj (e_outputs) + cross-attn + out-proj + residual
# ---------------------------------------------------------------------------
def cross_attn_block_kernel(x_ref, e_ref, mask_ref, a_ref, nb_ref,
                            wq_ref, bq_ref, wkv_ref, bkv_ref, wo_ref, bo_ref,
                            o_ref, *, nhead, scale):
    x = x_ref[0]                                           # (Sq, D)
    e = e_ref[0]                                           # (Sk, D) — not normalized
    D = x.shape[-1]
    x2 = _norm(x, a_ref[...], nb_ref[...])
    q = jnp.dot(x2.astype(MATMUL_DTYPE), wq_ref[...],
                preferred_element_type=jnp.float32) + bq_ref[...]
    kv = jnp.dot(e.astype(MATMUL_DTYPE), wkv_ref[...],
                 preferred_element_type=jnp.float32) + bkv_ref[...]
    k, v = kv[:, :D], kv[:, D:]
    attn = _mha_core(q, k, v, mask_ref[0], nhead, scale)   # (Sq, D)
    out = jnp.dot(attn.astype(MATMUL_DTYPE), wo_ref[...],
                  preferred_element_type=jnp.float32) + bo_ref[...]
    o_ref[0] = (x + out).astype(o_ref.dtype)


# ---------------------------------------------------------------------------
# Kernel 3: norm3 + FeedForward + residual
# ---------------------------------------------------------------------------
def ff_block_kernel(x_ref, a_ref, nb_ref, w1_ref, b1_ref, w2_ref, b2_ref, o_ref):
    x = x_ref[0]                                           # (S, D)
    x2 = _norm(x, a_ref[...], nb_ref[...])
    h = jnp.dot(x2.astype(MATMUL_DTYPE), w1_ref[...],
                preferred_element_type=jnp.float32) + b1_ref[...]
    h = jnp.maximum(h, 0.0)
    y = jnp.dot(h.astype(MATMUL_DTYPE), w2_ref[...],
                preferred_element_type=jnp.float32) + b2_ref[...]
    o_ref[0] = (x + y).astype(o_ref.dtype)


# ---------------------------------------------------------------------------
# pallas_call wrappers (grid over batch, "parallel" for v7x dual-TensorCore)
# ---------------------------------------------------------------------------
def _batched_spec(shape):
    """One batch element per grid step; full extent on the trailing dims."""
    return pl.BlockSpec((1,) + tuple(shape[1:]), lambda b: (b,) + (0,) * (len(shape) - 1))


def _rep_spec(shape):
    """Whole (small) parameter array, re-used every grid step."""
    return pl.BlockSpec(tuple(shape), lambda b: (0,) * len(shape))


def self_attn_block(x, trg_mask, p, nhead):
    B, S, D = x.shape
    scale = 1.0 / math.sqrt(D // nhead)
    args = (x, trg_mask, p["norm_alpha"], p["norm_bias"],
            p["wqkv"], p["bqkv"], p["wo"], p["bo"])
    return pl.pallas_call(
        partial(self_attn_block_kernel, nhead=nhead, scale=scale),
        out_shape=jax.ShapeDtypeStruct((B, S, D), x.dtype),
        grid=(B,),
        in_specs=[_batched_spec(x.shape), _batched_spec(trg_mask.shape)]
                 + [_rep_spec(a.shape) for a in args[2:]],
        out_specs=_batched_spec((B, S, D)),
        compiler_params=pltpu.CompilerParams(dimension_semantics=("parallel",)),
    )(*args)


def cross_attn_block(x, e_outputs, src_mask, p, nhead):
    B, S, D = x.shape
    scale = 1.0 / math.sqrt(D // nhead)
    args = (x, e_outputs, src_mask, p["norm_alpha"], p["norm_bias"],
            p["wq"], p["bq"], p["wkv"], p["bkv"], p["wo"], p["bo"])
    return pl.pallas_call(
        partial(cross_attn_block_kernel, nhead=nhead, scale=scale),
        out_shape=jax.ShapeDtypeStruct((B, S, D), x.dtype),
        grid=(B,),
        in_specs=[_batched_spec(x.shape), _batched_spec(e_outputs.shape),
                  _batched_spec(src_mask.shape)]
                 + [_rep_spec(a.shape) for a in args[3:]],
        out_specs=_batched_spec((B, S, D)),
        compiler_params=pltpu.CompilerParams(dimension_semantics=("parallel",)),
    )(*args)


def ff_block(x, p):
    B, S, D = x.shape
    args = (x, p["norm_alpha"], p["norm_bias"],
            p["w1"], p["b1"], p["w2"], p["b2"])
    return pl.pallas_call(
        ff_block_kernel,
        out_shape=jax.ShapeDtypeStruct((B, S, D), x.dtype),
        grid=(B,),
        in_specs=[_batched_spec(x.shape)] + [_rep_spec(a.shape) for a in args[1:]],
        out_specs=_batched_spec((B, S, D)),
        compiler_params=pltpu.CompilerParams(dimension_semantics=("parallel",)),
    )(*args)


# ---------------------------------------------------------------------------
# DecoderLayer forward: 3 fused pallas_calls
# ---------------------------------------------------------------------------
def decoder_layer(x, e_outputs, src_mask, trg_mask, params, nhead):
    x = self_attn_block(x, trg_mask, params["block1"], nhead)
    x = cross_attn_block(x, e_outputs, src_mask, params["block2"], nhead)
    x = ff_block(x, params["block3"])
    return x


# ---------------------------------------------------------------------------
# Deterministic parameter init (weights stored bf16, pre-transposed (in, out);
# QKV / KV weights pre-concatenated along the output dim)
# ---------------------------------------------------------------------------
def init_params(key, d_model, nhead, dim_feedforward):
    def dense(k, n_in, n_out):
        kw, kb = jax.random.split(k)
        w = (jax.random.normal(kw, (n_in, n_out), jnp.float32) * 0.02)
        b = jax.random.normal(kb, (1, n_out), jnp.float32) * 0.02
        return w.astype(MATMUL_DTYPE), b

    keys = jax.random.split(key, 10)
    ones = jnp.ones((1, d_model), jnp.float32)
    zeros = jnp.zeros((1, d_model), jnp.float32)

    # Self-attention: fused QKV weight (D, 3D)
    wq1, bq1 = dense(keys[0], d_model, d_model)
    wk1, bk1 = dense(keys[1], d_model, d_model)
    wv1, bv1 = dense(keys[2], d_model, d_model)
    wo1, bo1 = dense(keys[3], d_model, d_model)
    block1 = {
        "norm_alpha": ones, "norm_bias": zeros,
        "wqkv": jnp.concatenate([wq1, wk1, wv1], axis=1),
        "bqkv": jnp.concatenate([bq1, bk1, bv1], axis=1),
        "wo": wo1, "bo": bo1,
    }

    # Cross-attention: Q weight + fused KV weight (D, 2D)
    wq2, bq2 = dense(keys[4], d_model, d_model)
    wk2, bk2 = dense(keys[5], d_model, d_model)
    wv2, bv2 = dense(keys[6], d_model, d_model)
    wo2, bo2 = dense(keys[7], d_model, d_model)
    block2 = {
        "norm_alpha": ones, "norm_bias": zeros,
        "wq": wq2, "bq": bq2,
        "wkv": jnp.concatenate([wk2, wv2], axis=1),
        "bkv": jnp.concatenate([bk2, bv2], axis=1),
        "wo": wo2, "bo": bo2,
    }

    # Feed-forward
    w1, b1 = dense(keys[8], d_model, dim_feedforward)
    w2, b2 = dense(keys[9], dim_feedforward, d_model)
    block3 = {
        "norm_alpha": ones, "norm_bias": zeros,
        "w1": w1, "b1": b1, "w2": w2, "b2": b2,
    }

    return {"block1": block1, "block2": block2, "block3": block3}


if __name__ == "__main__":
    d_model = 32
    nhead = 4
    dim_feedforward = 64
    B, S_trg, S_src = 2, 8, 8

    key = jax.random.PRNGKey(0)
    k_param, k_x, k_enc = jax.random.split(key, 3)

    params = init_params(k_param, d_model, nhead, dim_feedforward)

    x = jax.random.normal(k_x, (B, S_trg, d_model), jnp.float32)
    e_outputs = jax.random.normal(k_enc, (B, S_src, d_model), jnp.float32)

    # src_mask: (B, 1, S_src) all-visible; trg_mask: (B, S_trg, S_trg) causal.
    src_mask = jnp.ones((B, 1, S_src), jnp.float32)
    trg_mask = jnp.broadcast_to(
        jnp.tril(jnp.ones((S_trg, S_trg), jnp.float32)), (B, S_trg, S_trg)
    )

    out = decoder_layer(x, e_outputs, src_mask, trg_mask, params, nhead)
    out = jax.block_until_ready(out)
    assert out.shape == (B, S_trg, d_model) and jnp.all(jnp.isfinite(out))
    print("KERNEL_OK")
</pallas_src>

<mosaic_0001>
module attributes {stable_mosaic.version = 11 : i64} {
  func.func @self_attn_block_kernel(%arg0: i32, %arg1: memref<1x8x32xf32, #tpu.memory_space<vmem>>, %arg2: memref<1x8x8xf32, #tpu.memory_space<vmem>>, %arg3: memref<1x32xf32, #tpu.memory_space<vmem>>, %arg4: memref<1x32xf32, #tpu.memory_space<vmem>>, %arg5: memref<32x96xbf16, #tpu.memory_space<vmem>>, %arg6: memref<1x96xf32, #tpu.memory_space<vmem>>, %arg7: memref<32x32xbf16, #tpu.memory_space<vmem>>, %arg8: memref<1x32xf32, #tpu.memory_space<vmem>>, %arg9: memref<1x8x32xf32, #tpu.memory_space<vmem>>) attributes {dimension_semantics = [#tpu.dimension_semantics<parallel>], iteration_bounds = array<i64: 2>, scalar_prefetch = 0 : i64, scratch_operands = 0 : i64, tpu.core_type = #tpu.core_type<tc>, window_params = [{transform_indices = @transform_0, window_bounds = array<i64: 1, 8, 32>}, {transform_indices = @transform_1, window_bounds = array<i64: 1, 8, 8>}, {pipeline_mode = #tpu.pipeline_mode<synchronous>, transform_indices = @transform_2, window_bounds = array<i64: 1, 32>}, {pipeline_mode = #tpu.pipeline_mode<synchronous>, transform_indices = @transform_3, window_bounds = array<i64: 1, 32>}, {pipeline_mode = #tpu.pipeline_mode<synchronous>, transform_indices = @transform_4, window_bounds = array<i64: 32, 96>}, {pipeline_mode = #tpu.pipeline_mode<synchronous>, transform_indices = @transform_5, window_bounds = array<i64: 1, 96>}, {pipeline_mode = #tpu.pipeline_mode<synchronous>, transform_indices = @transform_6, window_bounds = array<i64: 32, 32>}, {pipeline_mode = #tpu.pipeline_mode<synchronous>, transform_indices = @transform_7, window_bounds = array<i64: 1, 32>}, {transform_indices = @transform_8, window_bounds = array<i64: 1, 8, 32>}]} {
    %c0 = arith.constant 0 : index
    %c0_0 = arith.constant 0 : index
    %c0_1 = arith.constant 0 : index
    %0 = vector.load %arg1[%c0, %c0_0, %c0_1] : memref<1x8x32xf32, #tpu.memory_space<vmem>>, vector<1x8x32xf32>
    %1 = vector.shape_cast %0 : vector<1x8x32xf32> to vector<8x32xf32>
    %c0_2 = arith.constant 0 : index
    %c0_3 = arith.constant 0 : index
    %2 = vector.load %arg3[%c0_2, %c0_3] : memref<1x32xf32, #tpu.memory_space<vmem>>, vector<1x32xf32>
    %c0_4 = arith.constant 0 : index
    %c0_5 = arith.constant 0 : index
    %3 = vector.load %arg4[%c0_4, %c0_5] : memref<1x32xf32, #tpu.memory_space<vmem>>, vector<1x32xf32>
    %cst = arith.constant dense<0.000000e+00> : vector<8xf32>
    %4 = vector.multi_reduction <add>, %1, %cst [1] : vector<8x32xf32> to vector<8xf32>
    %5 = vector.shape_cast %4 : vector<8xf32> to vector<8x1xf32>
    %cst_6 = arith.constant 3.200000e+01 : f32
    %6 = vector.broadcast %cst_6 : f32 to vector<8x1xf32>
    %7 = arith.divf %5, %6 : vector<8x1xf32>
    %8 = vector.broadcast %7 : vector<8x1xf32> to vector<8x32xf32>
    %9 = arith.subf %1, %8 : vector<8x32xf32>
    %10 = arith.mulf %9, %9 : vector<8x32xf32>
    %cst_7 = arith.constant dense<0.000000e+00> : vector<8xf32>
    %11 = vector.multi_reduction <add>, %10, %cst_7 [1] : vector<8x32xf32> to vector<8xf32>
    %12 = vector.shape_cast %11 : vector<8xf32> to vector<8x1xf32>
    %cst_8 = arith.constant 0.0322580636 : f32
    %13 = vector.broadcast %cst_8 : f32 to vector<8x1xf32>
    %14 = arith.mulf %12, %13 : vector<8x1xf32>
    %15 = math.sqrt %14 : vector<8x1xf32>
    %cst_9 = arith.constant 9.99999997E-7 : f32
    %16 = vector.broadcast %cst_9 : f32 to vector<8x1xf32>
    %17 = arith.addf %15, %16 : vector<8x1xf32>
    %18 = tpu.reciprocal %17 : vector<8x1xf32> -> vector<8x1xf32>
    %19 = vector.broadcast %18 : vector<8x1xf32> to vector<8x32xf32>
    %20 = arith.mulf %9, %19 : vector<8x32xf32>
    %21 = vector.broadcast %2 : vector<1x32xf32> to vector<8x32xf32>
    %22 = arith.mulf %21, %20 : vector<8x32xf32>
    %23 = vector.broadcast %3 : vector<1x32xf32> to vector<8x32xf32>
    %24 = arith.addf %22, %23 : vector<8x32xf32>
    %25 = arith.truncf %24 : vector<8x32xf32> to vector<8x32xbf16>
    %c0_10 = arith.constant 0 : index
    %c0_11 = arith.constant 0 : index
    %26 = vector.load %arg5[%c0_10, %c0_11] : memref<32x96xbf16, #tpu.memory_space<vmem>>, vector<32x96xbf16>
    %cst_12 = arith.constant dense<0.000000e+00> : vector<8x96xf32>
    %27 = tpu.matmul %25, %26, %cst_12 {dimension_numbers = #tpu.dot_dimension_numbers<[1], [0], [0], [1], [0, 0, 1, 1], [], []>} : vector<8x32xbf16>, vector<32x96xbf16>, vector<8x96xf32> -> vector<8x96xf32>
    %c0_13 = arith.constant 0 : index
    %c0_14 = arith.constant 0 : index
    %28 = vector.load %arg6[%c0_13, %c0_14] : memref<1x96xf32, #tpu.memory_space<vmem>>, vector<1x96xf32>
    %29 = vector.broadcast %28 : vector<1x96xf32> to vector<8x96xf32>
    %30 = arith.addf %27, %29 : vector<8x96xf32>
    %31 = vector.extract_strided_slice %30 {offsets = [0, 0], sizes = [8, 32], strides = [1, 1]} : vector<8x96xf32> to vector<8x32xf32>
    %32 = vector.extract_strided_slice %30 {offsets = [0, 32], sizes = [8, 32], strides = [1, 1]} : vector<8x96xf32> to vector<8x32xf32>
    %33 = vector.extract_strided_slice %30 {offsets = [0, 64], sizes = [8, 32], strides = [1, 1]} : vector<8x96xf32> to vector<8x32xf32>
    %c0_15 = arith.constant 0 : index
    %c0_16 = arith.constant 0 : index
    %c0_17 = arith.constant 0 : index
    %34 = vector.load %arg2[%c0_15, %c0_16, %c0_17] : memref<1x8x8xf32, #tpu.memory_space<vmem>>, vector<1x8x8xf32>
    %35 = vector.shape_cast %34 : vector<1x8x8xf32> to vector<8x8xf32>
    %36 = vector.extract_strided_slice %31 {offsets = [0, 0], sizes = [8, 8], strides = [1, 1]} : vector<8x32xf32> to vector<8x8xf32>
    %37 = arith.truncf %36 : vector<8x8xf32> to vector<8x8xbf16>
    %38 = vector.extract_strided_slice %32 {offsets = [0, 0], sizes = [8, 8], strides = [1, 1]} : vector<8x32xf32> to vector<8x8xf32>
    %39 = arith.truncf %38 : vector<8x8xf32> to vector<8x8xbf16>
    %40 = vector.extract_strided_slice %33 {offsets = [0, 0], sizes = [8, 8], strides = [1, 1]} : vector<8x32xf32> to vector<8x8xf32>
    %41 = arith.truncf %40 : vector<8x8xf32> to vector<8x8xbf16>
    %cst_18 = arith.constant dense<0.000000e+00> : vector<8x8xf32>
    %42 = tpu.matmul %37, %39, %cst_18 {dimension_numbers = #tpu.dot_dimension_numbers<[1], [1], [0], [0], [0, 0, 1, 0], [], []>} : vector<8x8xbf16>, vector<8x8xbf16>, vector<8x8xf32> -> vector<8x8xf32>
    %cst_19 = arith.constant 0.353553385 : f32
    %43 = vector.broadcast %cst_19 : f32 to vector<8x8xf32>
    %44 = arith.mulf %42, %43 : vector<8x8xf32>
    %cst_20 = arith.constant 0.000000e+00 : f32
    %45 = vector.broadcast %cst_20 : f32 to vector<8x8xf32>
    %46 = arith.cmpf oeq, %35, %45 : vector<8x8xf32>
    %cst_21 = arith.constant -1.000000e+09 : f32
    %47 = vector.broadcast %cst_21 : f32 to vector<8x8xf32>
    %48 = arith.select %46, %47, %44 : vector<8x8xi1>, vector<8x8xf32>
    %cst_22 = arith.constant dense<0xFF800000> : vector<8xf32>
    %49 = vector.multi_reduction <maximumf>, %48, %cst_22 [1] : vector<8x8xf32> to vector<8xf32>
    %50 = vector.shape_cast %49 : vector<8xf32> to vector<8x1xf32>
    %51 = vector.broadcast %50 : vector<8x1xf32> to vector<8x8xf32>
    %52 = arith.subf %48, %51 : vector<8x8xf32>
    %53 = math.exp %52 : vector<8x8xf32>
    %cst_23 = arith.constant dense<0.000000e+00> : vector<8xf32>
    %54 = vector.multi_reduction <add>, %53, %cst_23 [1] : vector<8x8xf32> to vector<8xf32>
    %55 = vector.shape_cast %54 : vector<8xf32> to vector<8x1xf32>
    %56 = tpu.reciprocal %55 {approx = true} : vector<8x1xf32> -> vector<8x1xf32>
    %57 = vector.broadcast %56 : vector<8x1xf32> to vector<8x8xf32>
    %58 = arith.mulf %53, %57 : vector<8x8xf32>
    %59 = arith.truncf %58 : vector<8x8xf32> to vector<8x8xbf16>
    %cst_24 = arith.constant dense<0.000000e+00> : vector<8x8xf32>
    %60 = tpu.matmul %59, %41, %cst_24 {dimension_numbers = #tpu.dot_dimension_numbers<[1], [0], [0], [1], [0, 0, 1, 1], [], []>} : vector<8x8xbf16>, vector<8x8xbf16>, vector<8x8xf32> -> vector<8x8xf32>
    %61 = vector.extract_strided_slice %31 {offsets = [0, 8], sizes = [8, 8], strides = [1, 1]} : vector<8x32xf32> to vector<8x8xf32>
    %62 = arith.truncf %61 : vector<8x8xf32> to vector<8x8xbf16>
    %63 = vector.extract_strided_slice %32 {offsets = [0, 8], sizes = [8, 8], strides = [1, 1]} : vector<8x32xf32> to vector<8x8xf32>
    %64 = arith.truncf %63 : vector<8x8xf32> to vector<8x8xbf16>
    %65 = vector.extract_strided_slice %33 {offsets = [0, 8], sizes = [8, 8], strides = [1, 1]} : vector<8x32xf32> to vector<8x8xf32>
    %66 = arith.truncf %65 : vector<8x8xf32> to vector<8x8xbf16>
    %cst_25 = arith.constant dense<0.000000e+00> : vector<8x8xf32>
    %67 = tpu.matmul %62, %64, %cst_25 {dimension_numbers = #tpu.dot_dimension_numbers<[1], [1], [0], [0], [0, 0, 1, 0], [], []>} : vector<8x8xbf16>, vector<8x8xbf16>, vector<8x8xf32> -> vector<8x8xf32>
    %cst_26 = arith.constant 0.353553385 : f32
    %68 = vector.broadcast %cst_26 : f32 to vector<8x8xf32>
    %69 = arith.mulf %67, %68 : vector<8x8xf32>
    %cst_27 = arith.constant 0.000000e+00 : f32
    %70 = vector.broadcast %cst_27 : f32 to vector<8x8xf32>
    %71 = arith.cmpf oeq, %35, %70 : vector<8x8xf32>
    %cst_28 = arith.constant -1.000000e+09 : f32
    %72 = vector.broadcast %cst_28 : f32 to vector<8x8xf32>
    %73 = arith.select %71, %72, %69 : vector<8x8xi1>, vector<8x8xf32>
    %cst_29 = arith.constant dense<0xFF800000> : vector<8xf32>
    %74 = vector.multi_reduction <maximumf>, %73, %cst_29 [1] : vector<8x8xf32> to vector<8xf32>
    %75 = vector.shape_cast %74 : vector<8xf32> to vector<8x1xf32>
    %76 = vector.broadcast %75 : vector<8x1xf32> to vector<8x8xf32>
    %77 = arith.subf %73, %76 : vector<8x8xf32>
    %78 = math.exp %77 : vector<8x8xf32>
    %cst_30 = arith.constant dense<0.000000e+00> : vector<8xf32>
    %79 = vector.multi_reduction <add>, %78, %cst_30 [1] : vector<8x8xf32> to vector<8xf32>
    %80 = vector.shape_cast %79 : vector<8xf32> to vector<8x1xf32>
    %81 = tpu.reciprocal %80 {approx = true} : vector<8x1xf32> -> vector<8x1xf32>
    %82 = vector.broadcast %81 : vector<8x1xf32> to vector<8x8xf32>
    %83 = arith.mulf %78, %82 : vector<8x8xf32>
    %84 = arith.truncf %83 : vector<8x8xf32> to vector<8x8xbf16>
    %cst_31 = arith.constant dense<0.000000e+00> : vector<8x8xf32>
    %85 = tpu.matmul %84, %66, %cst_31 {dimension_numbers = #tpu.dot_dimension_numbers<[1], [0], [0], [1], [0, 0, 1, 1], [], []>} : vector<8x8xbf16>, vector<8x8xbf16>, vector<8x8xf32> -> vector<8x8xf32>
    %86 = vector.extract_strided_slice %31 {offsets = [0, 16], sizes = [8, 8], strides = [1, 1]} : vector<8x32xf32> to vector<8x8xf32>
    %87 = arith.truncf %86 : vector<8x8xf32> to vector<8x8xbf16>
    %88 = vector.extract_strided_slice %32 {offsets = [0, 16], sizes = [8, 8], strides = [1, 1]} : vector<8x32xf32> to vector<8x8xf32>
    %89 = arith.truncf %88 : vector<8x8xf32> to vector<8x8xbf16>
    %90 = vector.extract_strided_slice %33 {offsets = [0, 16], sizes = [8, 8], strides = [1, 1]} : vector<8x32xf32> to vector<8x8xf32>
    %91 = arith.truncf %90 : vector<8x8xf32> to vector<8x8xbf16>
    %cst_32 = arith.constant dense<0.000000e+00> : vector<8x8xf32>
    %92 = tpu.matmul %87, %89, %cst_32 {dimension_numbers = #tpu.dot_dimension_numbers<[1], [1], [0], [0], [0, 0, 1, 0], [], []>} : vector<8x8xbf16>, vector<8x8xbf16>, vector<8x8xf32> -> vector<8x8xf32>
    %cst_33 = arith.constant 0.353553385 : f32
    %93 = vector.broadcast %cst_33 : f32 to vector<8x8xf32>
    %94 = arith.mulf %92, %93 : vector<8x8xf32>
    %cst_34 = arith.constant 0.000000e+00 : f32
    %95 = vector.broadcast %cst_34 : f32 to vector<8x8xf32>
    %96 = arith.cmpf oeq, %35, %95 : vector<8x8xf32>
    %cst_35 = arith.constant -1.000000e+09 : f32
    %97 = vector.broadcast %cst_35 : f32 to vector<8x8xf32>
    %98 = arith.select %96, %97, %94 : vector<8x8xi1>, vector<8x8xf32>
    %cst_36 = arith.constant dense<0xFF800000> : vector<8xf32>
    %99 = vector.multi_reduction <maximumf>, %98, %cst_36 [1] : vector<8x8xf32> to vector<8xf32>
    %100 = vector.shape_cast %99 : vector<8xf32> to vector<8x1xf32>
    %101 = vector.broadcast %100 : vector<8x1xf32> to vector<8x8xf32>
    %102 = arith.subf %98, %101 : vector<8x8xf32>
    %103 = math.exp %102 : vector<8x8xf32>
    %cst_37 = arith.constant dense<0.000000e+00> : vector<8xf32>
    %104 = vector.multi_reduction <add>, %103, %cst_37 [1] : vector<8x8xf32> to vector<8xf32>
    %105 = vector.shape_cast %104 : vector<8xf32> to vector<8x1xf32>
    %106 = tpu.reciprocal %105 {approx = true} : vector<8x1xf32> -> vector<8x1xf32>
    %107 = vector.broadcast %106 : vector<8x1xf32> to vector<8x8xf32>
    %108 = arith.mulf %103, %107 : vector<8x8xf32>
    %109 = arith.truncf %108 : vector<8x8xf32> to vector<8x8xbf16>
    %cst_38 = arith.constant dense<0.000000e+00> : vector<8x8xf32>
    %110 = tpu.matmul %109, %91, %cst_38 {dimension_numbers = #tpu.dot_dimension_numbers<[1], [0], [0], [1], [0, 0, 1, 1], [], []>} : vector<8x8xbf16>, vector<8x8xbf16>, vector<8x8xf32> -> vector<8x8xf32>
    %111 = vector.extract_strided_slice %31 {offsets = [0, 24], sizes = [8, 8], strides = [1, 1]} : vector<8x32xf32> to vector<8x8xf32>
    %112 = arith.truncf %111 : vector<8x8xf32> to vector<8x8xbf16>
    %113 = vector.extract_strided_slice %32 {offsets = [0, 24], sizes = [8, 8], strides = [1, 1]} : vector<8x32xf32> to vector<8x8xf32>
    %114 = arith.truncf %113 : vector<8x8xf32> to vector<8x8xbf16>
    %115 = vector.extract_strided_slice %33 {offsets = [0, 24], sizes = [8, 8], strides = [1, 1]} : vector<8x32xf32> to vector<8x8xf32>
    %116 = arith.truncf %115 : vector<8x8xf32> to vector<8x8xbf16>
    %cst_39 = arith.constant dense<0.000000e+00> : vector<8x8xf32>
    %117 = tpu.matmul %112, %114, %cst_39 {dimension_numbers = #tpu.dot_dimension_numbers<[1], [1], [0], [0], [0, 0, 1, 0], [], []>} : vector<8x8xbf16>, vector<8x8xbf16>, vector<8x8xf32> -> vector<8x8xf32>
    %cst_40 = arith.constant 0.353553385 : f32
    %118 = vector.broadcast %cst_40 : f32 to vector<8x8xf32>
    %119 = arith.mulf %117, %118 : vector<8x8xf32>
    %cst_41 = arith.constant 0.000000e+00 : f32
    %120 = vector.broadcast %cst_41 : f32 to vector<8x8xf32>
    %121 = arith.cmpf oeq, %35, %120 : vector<8x8xf32>
    %cst_42 = arith.constant -1.000000e+09 : f32
    %122 = vector.broadcast %cst_42 : f32 to vector<8x8xf32>
    %123 = arith.select %121, %122, %119 : vector<8x8xi1>, vector<8x8xf32>
    %cst_43 = arith.constant dense<0xFF800000> : vector<8xf32>
    %124 = vector.multi_reduction <maximumf>, %123, %cst_43 [1] : vector<8x8xf32> to vector<8xf32>
    %125 = vector.shape_cast %124 : vector<8xf32> to vector<8x1xf32>
    %126 = vector.broadcast %125 : vector<8x1xf32> to vector<8x8xf32>
    %127 = arith.subf %123, %126 : vector<8x8xf32>
    %128 = math.exp %127 : vector<8x8xf32>
    %cst_44 = arith.constant dense<0.000000e+00> : vector<8xf32>
    %129 = vector.multi_reduction <add>, %128, %cst_44 [1] : vector<8x8xf32> to vector<8xf32>
    %130 = vector.shape_cast %129 : vector<8xf32> to vector<8x1xf32>
    %131 = tpu.reciprocal %130 {approx = true} : vector<8x1xf32> -> vector<8x1xf32>
    %132 = vector.broadcast %131 : vector<8x1xf32> to vector<8x8xf32>
    %133 = arith.mulf %128, %132 : vector<8x8xf32>
    %134 = arith.truncf %133 : vector<8x8xf32> to vector<8x8xbf16>
    %cst_45 = arith.constant dense<0.000000e+00> : vector<8x8xf32>
    %135 = tpu.matmul %134, %116, %cst_45 {dimension_numbers = #tpu.dot_dimension_numbers<[1], [0], [0], [1], [0, 0, 1, 1], [], []>} : vector<8x8xbf16>, vector<8x8xbf16>, vector<8x8xf32> -> vector<8x8xf32>
    %136 = tpu.concatenate %60, %85, %110, %135 in 1 : vector<8x8xf32>, vector<8x8xf32>, vector<8x8xf32>, vector<8x8xf32> -> vector<8x32xf32>
    %137 = arith.truncf %136 : vector<8x32xf32> to vector<8x32xbf16>
    %c0_46 = arith.constant 0 : index
    %c0_47 = arith.constant 0 : index
    %138 = vector.load %arg7[%c0_46, %c0_47] : memref<32x32xbf16, #tpu.memory_space<vmem>>, vector<32x32xbf16>
    %cst_48 = arith.constant dense<0.000000e+00> : vector<8x32xf32>
    %139 = tpu.matmul %137, %138, %cst_48 {dimension_numbers = #tpu.dot_dimension_numbers<[1], [0], [0], [1], [0, 0, 1, 1], [], []>} : vector<8x32xbf16>, vector<32x32xbf16>, vector<8x32xf32> -> vector<8x32xf32>
    %c0_49 = arith.constant 0 : index
    %c0_50 = arith.constant 0 : index
    %140 = vector.load %arg8[%c0_49, %c0_50] : memref<1x32xf32, #tpu.memory_space<vmem>>, vector<1x32xf32>
    %141 = vector.broadcast %140 : vector<1x32xf32> to vector<8x32xf32>
    %142 = arith.addf %139, %141 : vector<8x32xf32>
    %143 = arith.addf %1, %142 : vector<8x32xf32>
    %c0_51 = arith.constant 0 : index
    %c0_52 = arith.constant 0 : index
    %c0_53 = arith.constant 0 : index
    %144 = vector.load %arg9[%c0_51, %c0_52, %c0_53] : memref<1x8x32xf32, #tpu.memory_space<vmem>>, vector<1x8x32xf32>
    %145 = vector.shape_cast %144 : vector<1x8x32xf32> to vector<8x32xf32>
    %146 = vector.shape_cast %143 : vector<8x32xf32> to vector<1x8x32xf32>
    tpu.vector_store %arg9[%c0_51, %c0_52, %c0_53], %146 {strides = array<i32>} : memref<1x8x32xf32, #tpu.memory_space<vmem>>, vector<1x8x32xf32>,
    return
  }
  func.func @transform_0(%arg0: i32) -> (i32, i32, i32) {
    %c0_i32 = arith.constant 0 : i32
    %c0_i32_0 = arith.constant 0 : i32
    %c0_i32_1 = arith.constant 0 : i32
    return %arg0, %c0_i32, %c0_i32_0 : i32, i32, i32
  }
  func.func @transform_1(%arg0: i32) -> (i32, i32, i32) {
    %c0_i32 = arith.constant 0 : i32
    %c0_i32_0 = arith.constant 0 : i32
    %c0_i32_1 = arith.constant 0 : i32
    return %arg0, %c0_i32, %c0_i32_0 : i32, i32, i32
  }
  func.func @transform_2(%arg0: i32) -> (i32, i32) {
    %c0_i32 = arith.constant 0 : i32
    %c0_i32_0 = arith.constant 0 : i32
    %c0_i32_1 = arith.constant 0 : i32
    return %c0_i32, %c0_i32_0 : i32, i32
  }
  func.func @transform_3(%arg0: i32) -> (i32, i32) {
    %c0_i32 = arith.constant 0 : i32
    %c0_i32_0 = arith.constant 0 : i32
    %c0_i32_1 = arith.constant 0 : i32
    return %c0_i32, %c0_i32_0 : i32, i32
  }
  func.func @transform_4(%arg0: i32) -> (i32, i32) {
    %c0_i32 = arith.constant 0 : i32
    %c0_i32_0 = arith.constant 0 : i32
    %c0_i32_1 = arith.constant 0 : i32
    return %c0_i32, %c0_i32_0 : i32, i32
  }
  func.func @transform_5(%arg0: i32) -> (i32, i32) {
    %c0_i32 = arith.constant 0 : i32
    %c0_i32_0 = arith.constant 0 : i32
    %c0_i32_1 = arith.constant 0 : i32
    return %c0_i32, %c0_i32_0 : i32, i32
  }
  func.func @transform_6(%arg0: i32) -> (i32, i32) {
    %c0_i32 = arith.constant 0 : i32
    %c0_i32_0 = arith.constant 0 : i32
    %c0_i32_1 = arith.constant 0 : i32
    return %c0_i32, %c0_i32_0 : i32, i32
  }
  func.func @transform_7(%arg0: i32) -> (i32, i32) {
    %c0_i32 = arith.constant 0 : i32
    %c0_i32_0 = arith.constant 0 : i32
    %c0_i32_1 = arith.constant 0 : i32
    return %c0_i32, %c0_i32_0 : i32, i32
  }
  func.func @transform_8(%arg0: i32) -> (i32, i32, i32) {
    %c0_i32 = arith.constant 0 : i32
    %c0_i32_0 = arith.constant 0 : i32
    %c0_i32_1 = arith.constant 0 : i32
    return %arg0, %c0_i32, %c0_i32_0 : i32, i32, i32
  }
}

</mosaic_0001>

<llo_original>
// kernel: tpu_custom_call.1
$region0: #{tpu_custom_call.1}
  #allocation0 [shape = 'u32[]', space=smem, size = 0x4, offset = 0x4, fixed_abs, tag = 'smem constant byte address 0x4 - core index']
  #allocation1 [shape = 'u32[144,128]{1,0:T(1,128)}', space=vmem, size = 0x12000, scoped, tag = 'internal scratch']
  %s0 = inlined_call_operand.hbm [shape: f32[2,8,32], index: 0, kind: input, shape index: {}]
  %s1 = inlined_call_operand.hbm [shape: f32[2,8,8], index: 1, kind: input, shape index: {}]
  %s2 = inlined_call_operand.vmem [shape: f32[1,32], index: 2, kind: input, shape index: {}]
  %s3 = inlined_call_operand.vmem [shape: f32[1,32], index: 3, kind: input, shape index: {}]
  %s4 = inlined_call_operand.hbm [shape: bf16[32,96], index: 4, kind: input, shape index: {}]
  %s5 = inlined_call_operand.vmem [shape: f32[1,96], index: 5, kind: input, shape index: {}]
  %s6 = inlined_call_operand.vmem [shape: bf16[32,32], index: 6, kind: input, shape index: {}]
  %s7 = inlined_call_operand.vmem [shape: f32[1,32], index: 7, kind: input, shape index: {}]
  %s8 = inlined_call_operand.hbm [shape: f32[2,8,32], index: 8, kind: output, shape index: {}]
  %s9 = sld [smem:[#allocation0]]
  $region77: #{tpu_custom_call.1} parent=0
    _
  %s11 = ssub.s32 1, %s9
  %s12 = scalar_select 0, %s11, %s9
  $region1: #{tpu_custom_call.1} parent=0
    #allocation2 [shape = 'u8[8192]{0}', space=vmem, size = 0x2000, scoped, tag = 'input window, operand 0']
    #allocation3 [shape = 's32[2]{0}', space=sflag, size = 0x8, scoped, tag = 'scoped memory for tpu_custom_call.1']
    #allocation4 [shape = 's32[2]{0}', space=sflag, size = 0x8, scoped, tag = 'scoped memory for tpu_custom_call.1']
    #allocation5 [shape = 'u8[8192]{0}', space=vmem, size = 0x2000, scoped, tag = 'input window, operand 1']
    #allocation6 [shape = 's32[2]{0}', space=sflag, size = 0x8, scoped, tag = 'scoped memory for tpu_custom_call.1']
    #allocation7 [shape = 'u8[8192]{0}', space=vmem, size = 0x2000, scoped, tag = 'input window, operand 4, single buffered']
    #allocation8 [shape = 'u8[8192]{0}', space=vmem, size = 0x2000, scoped, tag = 'output window, operand 0']
    %13 = vsyncpa [#allocation3], 0
    %s14 = scalar_lea.sflag [#allocation3], 1
    %15 = vsyncpa %s14, 0
    %16 = vsyncpa [#allocation6], 0
    %s17 = scalar_lea.sflag [#allocation6], 1
    %18 = vsyncpa %s17, 0
    %19 = vsyncpa [#allocation4], 0
    %s20 = scalar_lea.sflag [#allocation4], 1
    %21 = vsyncpa %s20, 0
    loop: start=0, step=1, limit=4
    $region2: #{tpu_custom_call.1} parent=1 // loop_pre_header
      _
    $region3: #{tpu_custom_call.1} parent=1 // loop_header
      %s23 = sphi 0, %s27
      %p24 = scmp.ge.s32.totalorder %s23, 4
      %s33 = sphi 0, %s35
      %s36 = sphi 0, %s33
      %s37 = sphi 0, %s36
      %s53 = sphi 0, %s37
      %s59 = sphi 0, %s61
      %s62 = sphi 0, %s59
      %s63 = sphi 0, %s62
      %s79 = sphi 0, %s63
      %s83 = sphi 0, %s83
      %s85 = sphi 0, %s83
      %s86 = sphi 0, %s85
      %s100 = sphi 0, %s86
      %s104 = sphi 0, %s104
      %s106 = sphi 0, %s104
      %s107 = sphi 0, %s106
      %s121 = sphi 0, %s107
      %s125 = sphi 0, %s125
      %s127 = sphi 0, %s125
      %s128 = sphi 0, %s127
      %s142 = sphi 0, %s128
      %s146 = sphi 0, %s146
      %s148 = sphi 0, %s146
      %s149 = sphi 0, %s148
      %s163 = sphi 0, %s149
      %s167 = sphi 0, %s167
      %s169 = sphi 0, %s167
      %s170 = sphi 0, %s169
      %s184 = sphi 0, %s170
      %s188 = sphi 0, %s188
      %s190 = sphi 0, %s188
      %s191 = sphi 0, %s190
      %s205 = sphi 0, %s191
      %s211 = sphi 0, %s213
      %s214 = sphi 0, %s211
      %s215 = sphi 0, %s214
      %s231 = sphi 0, %s215
    $region4: #{tpu_custom_call.1} parent=1 // loop_header_branch
      %26 = sbr.rel (%p24) target = $region8
    $region5: #{tpu_custom_call.1} parent=1 // loop_body
      %s28 = ssub.s32 %s23, 1
      %s29 = ssub.s32 %s23, 2
      %s30 = sadd.s32 %s23, 1
      %s31 = ssub.s32 %s23, %s30
      %p32 = scmp.eq.s32.totalorder %s31, 0
      %s34 = sadd.s32 %s33, 1
      %s35 = scalar_select %p32, %s33, %s34
      %p38 = pneg %p32
      %p39 = scmp.eq.s32.totalorder %s23, 1
      %p40 = por %p38, %p39
      %p41 = scmp.ne.s32.totalorder %s33, %s36
      %p42 = scmp.eq.s32.totalorder %s23, 0
      %p43 = por %p41, %p42
      %p44 = scmp.ne.s32.totalorder %s33, %s36
      %p45 = scmp.eq.s32.totalorder %s28, 1
      %p46 = por %p44, %p45
      %p47 = scmp.ne.s32.totalorder %s36, %s37
      %p48 = scmp.eq.s32.totalorder %s28, 0
      %p49 = por %p47, %p48
      %p50 = scmp.ne.s32.totalorder %s36, %s37
      %p51 = scmp.eq.s32.totalorder %s29, 1
      %p52 = por %p50, %p51
      %p54 = scmp.ne.s32.totalorder %s37, %s53
      %p55 = scmp.eq.s32.totalorder %s29, 0
      %p56 = por %p54, %p55
      %s57 = ssub.s32 %s23, %s30
      %p58 = scmp.eq.s32.totalorder %s57, 0
      %s60 = sadd.s32 %s59, 1
      %s61 = scalar_select %p58, %s59, %s60
      %p64 = pneg %p58
      %p65 = scmp.eq.s32.totalorder %s23, 1
      %p66 = por %p64, %p65
      %p67 = scmp.ne.s32.totalorder %s59, %s62
      %p68 = scmp.eq.s32.totalorder %s23, 0
      %p69 = por %p67, %p68
      %p70 = scmp.ne.s32.totalorder %s59, %s62
      %p71 = scmp.eq.s32.totalorder %s28, 1
      %p72 = por %p70, %p71
      %p73 = scmp.ne.s32.totalorder %s62, %s63
      %p74 = scmp.eq.s32.totalorder %s28, 0
      %p75 = por %p73, %p74
      %p76 = scmp.ne.s32.totalorder %s62, %s63
      %p77 = scmp.eq.s32.totalorder %s29, 1
      %p78 = por %p76, %p77
      %p80 = scmp.ne.s32.totalorder %s63, %s79
      %p81 = scmp.eq.s32.totalorder %s29, 0
      %p82 = por %p80, %p81
      %s84 = sadd.s32 %s83, 1
      %p87 = scmp.eq.s32.totalorder %s23, 1
      %p88 = scmp.ne.s32.totalorder %s83, %s85
      %p89 = scmp.eq.s32.totalorder %s23, 0
      %p90 = por %p88, %p89
      %p91 = scmp.ne.s32.totalorder %s83, %s85
      %p92 = scmp.eq.s32.totalorder %s28, 1
      %p93 = por %p91, %p92
      %p94 = scmp.ne.s32.totalorder %s85, %s86
      %p95 = scmp.eq.s32.totalorder %s28, 0
      %p96 = por %p94, %p95
      %p97 = scmp.ne.s32.totalorder %s85, %s86
      %p98 = scmp.eq.s32.totalorder %s29, 1
      %p99 = por %p97, %p98
      %p101 = scmp.ne.s32.totalorder %s86, %s100
      %p102 = scmp.eq.s32.totalorder %s29, 0
      %p103 = por %p101, %p102
      %s105 = sadd.s32 %s104, 1
      %p108 = scmp.eq.s32.totalorder %s23, 1
      %p109 = scmp.ne.s32.totalorder %s104, %s106
      %p110 = scmp.eq.s32.totalorder %s23, 0
      %p111 = por %p109, %p110
      %p112 = scmp.ne.s32.totalorder %s104, %s106
      %p113 = scmp.eq.s32.totalorder %s28, 1
      %p114 = por %p112, %p113
      %p115 = scmp.ne.s32.totalorder %s106, %s107
      %p116 = scmp.eq.s32.totalorder %s28, 0
      %p117 = por %p115, %p116
      %p118 = scmp.ne.s32.totalorder %s106, %s107
      %p119 = scmp.eq.s32.totalorder %s29, 1
      %p120 = por %p118, %p119
      %p122 = scmp.ne.s32.totalorder %s107, %s121
      %p123 = scmp.eq.s32.totalorder %s29, 0
      %p124 = por %p122, %p123
      %s126 = sadd.s32 %s125, 1
      %p129 = scmp.eq.s32.totalorder %s23, 1
      %p130 = scmp.ne.s32.totalorder %s125, %s127
      %p131 = scmp.eq.s32.totalorder %s23, 0
      %p132 = por %p130, %p131
      %p133 = scmp.ne.s32.totalorder %s125, %s127
      %p134 = scmp.eq.s32.totalorder %s28, 1
      %p135 = por %p133, %p134
      %p136 = scmp.ne.s32.totalorder %s127, %s128
      %p137 = scmp.eq.s32.totalorder %s28, 0
      %p138 = por %p136, %p137
      %p139 = scmp.ne.s32.totalorder %s127, %s128
      %p140 = scmp.eq.s32.totalorder %s29, 1
      %p141 = por %p139, %p140
      %p143 = scmp.ne.s32.totalorder %s128, %s142
      %p144 = scmp.eq.s32.totalorder %s29, 0
      %p145 = por %p143, %p144
      %s147 = sadd.s32 %s146, 1
      %p150 = scmp.eq.s32.totalorder %s23, 1
      %p151 = scmp.ne.s32.totalorder %s146, %s148
      %p152 = scmp.eq.s32.totalorder %s23, 0
      %p153 = por %p151, %p152
      %p154 = scmp.ne.s32.totalorder %s146, %s148
      %p155 = scmp.eq.s32.totalorder %s28, 1
      %p156 = por %p154, %p155
      %p157 = scmp.ne.s32.totalorder %s148, %s149
      %p158 = scmp.eq.s32.totalorder %s28, 0
      %p159 = por %p157, %p158
      %p160 = scmp.ne.s32.totalorder %s148, %s149
      %p161 = scmp.eq.s32.totalorder %s29, 1
      %p162 = por %p160, %p161
      %p164 = scmp.ne.s32.totalorder %s149, %s163
      %p165 = scmp.eq.s32.totalorder %s29, 0
      %p166 = por %p164, %p165
      %s168 = sadd.s32 %s167, 1
      %p171 = scmp.eq.s32.totalorder %s23, 1
      %p172 = scmp.ne.s32.totalorder %s167, %s169
      %p173 = scmp.eq.s32.totalorder %s23, 0
      %p174 = por %p172, %p173
      %p175 = scmp.ne.s32.totalorder %s167, %s169
      %p176 = scmp.eq.s32.totalorder %s28, 1
      %p177 = por %p175, %p176
      %p178 = scmp.ne.s32.totalorder %s169, %s170
      %p179 = scmp.eq.s32.totalorder %s28, 0
      %p180 = por %p178, %p179
      %p181 = scmp.ne.s32.totalorder %s169, %s170
      %p182 = scmp.eq.s32.totalorder %s29, 1
      %p183 = por %p181, %p182
      %p185 = scmp.ne.s32.totalorder %s170, %s184
      %p186 = scmp.eq.s32.totalorder %s29, 0
      %p187 = por %p185, %p186
      %s189 = sadd.s32 %s188, 1
      %p192 = scmp.eq.s32.totalorder %s23, 1
      %p193 = scmp.ne.s32.totalorder %s188, %s190
      %p194 = scmp.eq.s32.totalorder %s23, 0
      %p195 = por %p193, %p194
      %p196 = scmp.ne.s32.totalorder %s188, %s190
      %p197 = scmp.eq.s32.totalorder %s28, 1
      %p198 = por %p196, %p197
      %p199 = scmp.ne.s32.totalorder %s190, %s191
      %p200 = scmp.eq.s32.totalorder %s28, 0
      %p201 = por %p199, %p200
      %p202 = scmp.ne.s32.totalorder %s190, %s191
      %p203 = scmp.eq.s32.totalorder %s29, 1
      %p204 = por %p202, %p203
      %p206 = scmp.ne.s32.totalorder %s191, %s205
      %p207 = scmp.eq.s32.totalorder %s29, 0
      %p208 = por %p206, %p207
      %s209 = ssub.s32 %s23, %s30
      %p210 = scmp.eq.s32.totalorder %s209, 0
      %s212 = sadd.s32 %s211, 1
      %s213 = scalar_select %p210, %s211, %s212
      %p216 = pneg %p210
      %p217 = scmp.eq.s32.totalorder %s23, 1
      %p218 = por %p216, %p217
      %p219 = scmp.ne.s32.totalorder %s211, %s214
      %p220 = scmp.eq.s32.totalorder %s23, 0
      %p221 = por %p219, %p220
      %p222 = scmp.ne.s32.totalorder %s211, %s214
      %p223 = scmp.eq.s32.totalorder %s28, 1
      %p224 = por %p222, %p223
      %p225 = scmp.ne.s32.totalorder %s214, %s215
      %p226 = scmp.eq.s32.totalorder %s28, 0
      %p227 = por %p225, %p226
      %p228 = scmp.ne.s32.totalorder %s214, %s215
      %p229 = scmp.eq.s32.totalorder %s29, 1
      %p230 = por %p228, %p229
      %p232 = scmp.ne.s32.totalorder %s215, %s231
      %p233 = scmp.eq.s32.totalorder %s29, 0
      %p234 = por %p232, %p233
      %p235 = scmp.le.s32.totalorder 1, %s23
      %p236 = scmp.lt.s32.totalorder %s23, 3
      %p237 = pnand %p235, %p236
      %p238 = pneg %p237
      // Predicated region
      $region9: #{tpu_custom_call.1} parent=5 // pred_check
        _
      $region10: #{tpu_custom_call.1} parent=5 // pred_check_branch
        %240 = sbr.rel (%p237) target = $region12
      $region11: #{tpu_custom_call.1} parent=5 // pred_region
        %s241 = ssub.s32 %s23, 1
        // Predicated region
        $region13: #{tpu_custom_call.1} parent=11 // pred_check
          %p242 = pneg %p96
        $region14: #{tpu_custom_call.1} parent=11 // pred_check_branch
          %244 = sbr.rel (%p242) target = $region16
        $region15: #{tpu_custom_call.1} parent=11 // pred_region
          _
        $region16: #{tpu_custom_call.1} parent=11 // pred_fallthru
          _
        // Predicated region
        $region17: #{tpu_custom_call.1} parent=11 // pred_check
          %p245 = pneg %p117
        $region18: #{tpu_custom_call.1} parent=11 // pred_check_branch
          %247 = sbr.rel (%p245) target = $region20
        $region19: #{tpu_custom_call.1} parent=11 // pred_region
          _
        $region20: #{tpu_custom_call.1} parent=11 // pred_fallthru
          _
        // Predicated region
        $region21: #{tpu_custom_call.1} parent=11 // pred_check
          %p248 = pneg %p138
        $region22: #{tpu_custom_call.1} parent=11 // pred_check_branch
          %250 = sbr.rel (%p248) target = $region24
        $region23: #{tpu_custom_call.1} parent=11 // pred_region
          %s252 = ssub.s32 256, 256
          %253 = vsyncadd [#allocation6], %s252
          %s254 = sshll.u32 [#allocation7], 4
          %s255 = int_to_ptr.vmem [resolvable:$true] %s254
          %260 = dma.hbm_to_vmem [thread:$0]  %s4, 256, %s255, [#allocation6], 64, 64, 4
        $region24: #{tpu_custom_call.1} parent=11 // pred_fallthru
          _
        // Predicated region
        $region25: #{tpu_custom_call.1} parent=11 // pred_check
          %p261 = pneg %p159
        $region26: #{tpu_custom_call.1} parent=11 // pred_check_branch
          %263 = sbr.rel (%p261) target = $region28
        $region27: #{tpu_custom_call.1} parent=11 // pred_region
          _
        $region28: #{tpu_custom_call.1} parent=11 // pred_fallthru
          _
        // Predicated region
        $region29: #{tpu_custom_call.1} parent=11 // pred_check
          %p264 = pneg %p180
        $region30: #{tpu_custom_call.1} parent=11 // pred_check_branch
          %266 = sbr.rel (%p264) target = $region32
        $region31: #{tpu_custom_call.1} parent=11 // pred_region
          _
        $region32: #{tpu_custom_call.1} parent=11 // pred_fallthru
          _
        // Predicated region
        $region33: #{tpu_custom_call.1} parent=11 // pred_check
          %p267 = pneg %p201
        $region34: #{tpu_custom_call.1} parent=11 // pred_check_branch
          %269 = sbr.rel (%p267) target = $region36
        $region35: #{tpu_custom_call.1} parent=11 // pred_region
          _
        $region36: #{tpu_custom_call.1} parent=11 // pred_fallthru
          _
      $region12: #{tpu_custom_call.1} parent=5 // pred_fallthru
        _
      %p270 = scmp.lt.s32.totalorder %s23, 2
      // Predicated region
      $region37: #{tpu_custom_call.1} parent=5 // pred_check
        %p271 = pneg %p270
      $region38: #{tpu_custom_call.1} parent=5 // pred_check_branch
        %273 = sbr.rel (%p271) target = $region40
      $region39: #{tpu_custom_call.1} parent=5 // pred_region
        // Predicated region
        $region41: #{tpu_custom_call.1} parent=39 // pred_check
          %p274 = pneg %p43
        $region42: #{tpu_custom_call.1} parent=39 // pred_check_branch
          %276 = sbr.rel (%p274) target = $region44
        $region43: #{tpu_custom_call.1} parent=39 // pred_region
          %s277 = sand.u32 %s33, 1
          %s278 = scalar_lea.sflag [#allocation3], %s277
          %s279 = sand.u32 %s33, 1
          %s280 = smul.addr %s279, 8
          %s281 = scalar_lea.vmem [#allocation2], %s280
          %s283 = ssub.s32 128, 128
          %284 = vsyncadd %s278, %s283
          %s285 = smul.addr %s23, 128
          %s286 = scalar_lea.hbm %s0, %s285
          %s288 = sshll.u32 %s281, 4
          %s289 = int_to_ptr.vmem [resolvable:$true] %s288
          %291 = dma.hbm_to_vmem [thread:$0]  %s286, 128, %s289, %s278
        $region44: #{tpu_custom_call.1} parent=39 // pred_fallthru
          _
        // Predicated region
        $region45: #{tpu_custom_call.1} parent=39 // pred_check
          %p292 = pneg %p69
        $region46: #{tpu_custom_call.1} parent=39 // pred_check_branch
          %294 = sbr.rel (%p292) target = $region48
        $region47: #{tpu_custom_call.1} parent=39 // pred_region
          %s295 = sand.u32 %s23, 1
          %s296 = scalar_lea.sflag [#allocation6], %s295
          %s297 = sand.u32 %s59, 1
          %s298 = smul.addr %s297, 8
          %s299 = scalar_lea.vmem [#allocation5], %s298
          %s301 = ssub.s32 128, 128
          %302 = vsyncadd %s296, %s301
          %s303 = smul.addr %s23, 128
          %s304 = scalar_lea.hbm %s1, %s303
          %s306 = sshll.u32 %s299, 4
          %s307 = int_to_ptr.vmem [resolvable:$true] %s306
          %309 = dma.hbm_to_vmem [thread:$0]  %s304, 128, %s307, %s296
        $region48: #{tpu_custom_call.1} parent=39 // pred_fallthru
          _
      $region40: #{tpu_custom_call.1} parent=5 // pred_fallthru
        _
      %p310 = scmp.le.s32.totalorder 1, %s23
      %p311 = scmp.lt.s32.totalorder %s23, 3
      %p312 = pnand %p310, %p311
      %p313 = pneg %p312
      // Predicated region
      $region49: #{tpu_custom_call.1} parent=5 // pred_check
        _
      $region50: #{tpu_custom_call.1} parent=5 // pred_check_branch
        %315 = sbr.rel (%p312) target = $region52
      $region51: #{tpu_custom_call.1} parent=5 // pred_region
        %s316 = ssub.s32 %s23, 1
        %s317 = sand.u32 %s36, 1
        %s318 = scalar_lea.sflag [#allocation3], %s317
        %s319 = sand.u32 %s36, 1
        %s320 = smul.addr %s319, 8
        %s321 = scalar_lea.vmem [#allocation2], %s320
        // Predicated region
        $region53: #{tpu_custom_call.1} parent=51 // pred_check
          %p322 = pneg %p49
        $region54: #{tpu_custom_call.1} parent=51 // pred_check_branch
          %324 = sbr.rel (%p322) target = $region56
        $region55: #{tpu_custom_call.1} parent=51 // pred_region
          %325 = dma.done %s318, 128
        $region56: #{tpu_custom_call.1} parent=51 // pred_fallthru
          _
        %s326 = sand.u32 %s28, 1
        %s327 = scalar_lea.sflag [#allocation6], %s326
        %s328 = sand.u32 %s62, 1
        %s329 = smul.addr %s328, 8
        %s330 = scalar_lea.vmem [#allocation5], %s329
        // Predicated region
        $region57: #{tpu_custom_call.1} parent=51 // pred_check
          %p331 = pneg %p75
        $region58: #{tpu_custom_call.1} parent=51 // pred_check_branch
          %333 = sbr.rel (%p331) target = $region60
        $region59: #{tpu_custom_call.1} parent=51 // pred_region
          %334 = dma.done %s327, 128
        $region60: #{tpu_custom_call.1} parent=51 // pred_fallthru
          _
        // Predicated region
        $region61: #{tpu_custom_call.1} parent=51 // pred_check
          %p335 = pneg %p138
        $region62: #{tpu_custom_call.1} parent=51 // pred_check_branch
          %337 = sbr.rel (%p335) target = $region64
        $region63: #{tpu_custom_call.1} parent=51 // pred_region
          %338 = dma.done [#allocation6], 256
        $region64: #{tpu_custom_call.1} parent=51 // pred_fallthru
          _
        %s339 = sand.u32 %s36, 1
        %s340 = scalar_lea.sflag [#allocation3], %s339
        %s341 = sand.u32 %s36, 1
        %s342 = smul.addr %s341, 8
        %s343 = scalar_lea.vmem [#allocation2], %s342
        %p344 = pneg %p49
        %p345 = pneg %p46
        %s346 = sand.u32 %s28, 1
        %s347 = scalar_lea.sflag [#allocation6], %s346
        %s348 = sand.u32 %s62, 1
        %s349 = smul.addr %s348, 8
        %s350 = scalar_lea.vmem [#allocation5], %s349
        %p351 = pneg %p75
        %p352 = pneg %p72
        %p353 = pneg %p96
        %p354 = pneg %p93
        %p355 = pneg %p117
        %p356 = pneg %p114
        %p357 = pneg %p138
        %p358 = pneg %p135
        %p359 = pneg %p159
        %p360 = pneg %p156
        %p361 = pneg %p180
        %p362 = pneg %p177
        %p363 = pneg %p201
        %p364 = pneg %p198
        %p365 = pneg %p227
        %p366 = pneg %p224
        %s367 = sand.u32 %s214, 1
        %s368 = scalar_lea.sflag [#allocation4], %s367
        %s369 = sand.u32 %s214, 1
        %s370 = smul.addr %s369, 8
        %s371 = scalar_lea.vmem [#allocation8], %s370
        %v373 = vld [vmem:[%s321] sm:$0xff]
        %v374 = vld [vmem:[%s2] sm:$0x1]
        %v375 = vld [vmem:[%s3] sm:$0x1]
        %vm376 = vcmask 261120
        %v377 = vsel %vm376, %v373, 0.0
        %378 = vadd.xlane.f32.xlu0 %v377
        %v379 = vpop.xlane.xlu0 %378
        %v380 = vrcp.pop 32.0
        %v381 = vmul.f32 %v379, %v380
        %v382 = vsub.f32 %v373, %v381
        %v383 = vmul.f32 %v382, %v382
        %v384 = vsel %vm376, %v383, 0.0
        %385 = vadd.xlane.f32.xlu0 %v384
        %v386 = vpop.xlane.xlu0 %385
        %v387 = vmul.f32 %v386, 0.032258064
        %v388 = vrsqrt.pop %v387
        %v389 = vmul.f32 %v387, %v388
        %vm390 = vcmp.eq.f32.partialorder %v387, inf
        %v391 = vsel %vm390, %v387, %v389
        %vm392 = vcmp.eq.f32.partialorder %v387, 0.0
        %v393 = vand.u32 %v387, 2147483648
        %v394 = vsel %vm392, %v393, %v391
        %v395 = vadd.f32 %v394, 1e-06
        %v396 = vrcp.pop %v395
        %v397 = vmul.f32 %v382, %v396
        %v399 = vlaneseq
        %v400 = vshrl.u32 %v399, 7
        %v401 = vsub.s32 0, %v400
        %v402 = vrot.slane %v374, %v401
        %v404 = vmul.f32 %v402, %v397
        %v406 = vlaneseq
        %v407 = vshrl.u32 %v406, 7
        %v408 = vsub.s32 0, %v407
        %v409 = vrot.slane %v375, %v408
        %v411 = vadd.f32 %v404, %v409
        %v412 = vpack.c.bf16 %v411, %v411
        %v413 = vld [vmem:[#allocation7] sm:$0xf]
        %v414 = vld [vmem:[#allocation7 + $0x4] sm:$0xf]
        %v415 = vld [vmem:[#allocation7 + $0x8] sm:$0xf]
        %v416 = vld [vmem:[#allocation7 + $0xc] sm:$0xf]
        %v417 = vld [vmem:[%s5] sm:$0x1]
        %v419 = vlaneseq
        %v420 = vshrl.u32 %v419, 7
        %v421 = vsub.s32 0, %v420
        %v422 = vrot.slane %v417, %v421
        %v428 = vunpack.c.l.b16 %v413
        %v429 = vunpack.c.l.b16 %v414
        %v430 = vunpack.c.l.b16 %v415
        %v431 = vunpack.c.l.b16 %v416
        %v432 = vpack.c.b16 %v429, %v428
        %v433 = vpack.c.b16 %v431, %v430
        %v437 = vsel %vm376, %v412, 0
        %439 = vmatprep.subr.bf16.mxu0 0
        %440 = vmatpush1.bf16.msra.mxu0 %v432
        %441 = vmatprep.subr.bf16.mxu0 0
        %442 = vmatpush1.bf16.msra.mxu0 %v433
        %443 = vmatprep.subr.bf16.mxu0 0
        %444 = vmatpush1.bf16.msra.mxu0 0
        %445 = vmatprep.subr.bf16.mxu0 0
        %446 = vmatpush1.bf16.msra.mxu0 0
        %447 = vmatprep.subr.bf16.mxu0 0
        %448 = vmatpush1.bf16.msra.mxu0 0
        %449 = vmatprep.subr.bf16.mxu0 0
        %450 = vmatpush1.bf16.msra.mxu0 0
        %451 = vmatprep.subr.bf16.mxu0 0
        %452 = vmatpush1.bf16.msra.mxu0 0
        %453 = vmatprep.subr.bf16.mxu0 0
        %454 = vmatpush1.bf16.msra.mxu0 0
        %455 = vmatprep.subr.bf16.mxu0 0
        %456 = vmatpush1.bf16.msra.mxu0 0
        %457 = vmatprep.subr.bf16.mxu0 0
        %458 = vmatpush1.bf16.msra.mxu0 0
        %459 = vmatprep.subr.bf16.mxu0 0
        %460 = vmatpush1.bf16.msra.mxu0 0
        %461 = vmatprep.subr.bf16.mxu0 0
        %462 = vmatpush1.bf16.msra.mxu0 0
        %463 = vmatprep.subr.bf16.mxu0 0
        %464 = vmatpush1.bf16.msra.mxu0 0
        %465 = vmatprep.subr.bf16.mxu0 0
        %466 = vmatpush1.bf16.msra.mxu0 0
        %467 = vmatprep.subr.bf16.mxu0 0
        %468 = vmatpush1.bf16.msra.mxu0 0
        %469 = vmatprep.subr.bf16.mxu0 0
        %470 = vmatpush1.bf16.msra.mxu0 0
        %471 = vmatprep.mubr.bf16.mxu0 0
        %472 = vmatmul.mubr.bf16.gmra.mrb[0].mxu0 %v437
        %v473 = vpop.f32.mrb[0].mxu0
        %v474 = vadd.f32 %v422, %v473
        %v475 = vpop.f32.mrb[0].mxu0
        %v476 = vpop.f32.mrb[0].mxu0
        %v477 = vpop.f32.mrb[0].mxu0
        %478 = vdwg.mxu0
        %v479 = vld [vmem:[%s330] sm:$0xff]
        %v480 = vpack.c.bf16 %v474, %v474
        %482 = vrot.lane.b32.xlu0 %v480, 96
        %v483 = vpop.permute.xlu0 %482
        %vm484 = vcmask 64512
        %v486 = vsel %vm484, %v480, 0
        %v489 = vsel %vm484, %v483, 0
        %491 = vmatprep.subr.bf16.mxu0 0
        %492 = vmatpush1.bf16.xpose.msra.mxu0 %v489
        %493 = vmatprep.subr.bf16.mxu0 0
        %494 = vmatpush1.bf16.xpose.msra.mxu0 0
        %495 = vmatprep.subr.bf16.mxu0 0
        %496 = vmatpush1.bf16.xpose.msra.mxu0 0
        %497 = vmatprep.subr.bf16.mxu0 0
        %498 = vmatpush1.bf16.xpose.msra.mxu0 0
        %499 = vmatprep.subr.bf16.mxu0 0
        %500 = vmatpush1.bf16.xpose.msra.mxu0 0
        %501 = vmatprep.subr.bf16.mxu0 0
        %502 = vmatpush1.bf16.xpose.msra.mxu0 0
        %503 = vmatprep.subr.bf16.mxu0 0
        %504 = vmatpush1.bf16.xpose.msra.mxu0 0
        %505 = vmatprep.subr.bf16.mxu0 0
        %506 = vmatpush1.bf16.xpose.msra.mxu0 0
        %507 = vmatprep.subr.bf16.mxu0 0
        %508 = vmatpush1.bf16.xpose.msra.mxu0 0
        %509 = vmatprep.subr.bf16.mxu0 0
        %510 = vmatpush1.bf16.xpose.msra.mxu0 0
        %511 = vmatprep.subr.bf16.mxu0 0
        %512 = vmatpush1.bf16.xpose.msra.mxu0 0
        %513 = vmatprep.subr.bf16.mxu0 0
        %514 = vmatpush1.bf16.xpose.msra.mxu0 0
        %515 = vmatprep.subr.bf16.mxu0 0
        %516 = vmatpush1.bf16.xpose.msra.mxu0 0
        %517 = vmatprep.subr.bf16.mxu0 0
        %518 = vmatpush1.bf16.xpose.msra.mxu0 0
        %519 = vmatprep.subr.bf16.mxu0 0
        %520 = vmatpush1.bf16.xpose.msra.mxu0 0
        %521 = vmatprep.subr.bf16.mxu0 0
        %522 = vmatpush1.bf16.xpose.msra.mxu0 0
        %523 = vmatprep.mubr.bf16.mxu0 0
        %524 = vmatmul.mubr.bf16.gmra.mrb[0].mxu0 %v486
        %v525 = vpop.f32.mrb[0].mxu0
        %v526 = vadd.f32 0.0, %v525
        %v527 = vpop.f32.mrb[0].mxu0
        %v528 = vpop.f32.mrb[0].mxu0
        %v529 = vpop.f32.mrb[0].mxu0
        %530 = vdwg.mxu0
        %v531 = vmul.f32 %v526, 0.35355338
        %vm532 = vcmp.eq.f32.partialorder %v479, 0.0
        %v533 = vsel %vm532, -1e+09, %v531
        %v534 = vsel %vm484, %v533, -inf
        %535 = vmax.xlane.f32.xlu0 %v534
        %v536 = vpop.xlane.xlu0 %535
        %v537 = vsub.f32 %v533, %v536
        %v538 = vmul.f32 %v537, 1.442695
        %v539 = vpow.pop %v538
        %v540 = vsel %vm484, %v539, 0.0
        %541 = vadd.xlane.f32.xlu0 %v540
        %v542 = vpop.xlane.xlu0 %541
        %v543 = vrcp.pop %v542
        %v544 = vmul.f32 %v539, %v543
        %v545 = vpack.c.bf16 %v544, %v544
        %546 = vrot.lane.b32.xlu0 %v480, 64
        %v547 = vpop.permute.xlu0 %546
        %v549 = vsel %vm484, %v545, 0
        %vm551 = vcmask 1043456
        %v553 = vsel %vm551, %v547, 0
        %555 = vmatprep.subr.bf16.mxu0 0
        %556 = vmatpush1.bf16.msra.mxu0 %v553
        %557 = vmatprep.subr.bf16.mxu0 0
        %558 = vmatpush1.bf16.msra.mxu0 0
        %559 = vmatprep.subr.bf16.mxu0 0
        %560 = vmatpush1.bf16.msra.mxu0 0
        %561 = vmatprep.subr.bf16.mxu0 0
        %562 = vmatpush1.bf16.msra.mxu0 0
        %563 = vmatprep.subr.bf16.mxu0 0
        %564 = vmatpush1.bf16.msra.mxu0 0
        %565 = vmatprep.subr.bf16.mxu0 0
        %566 = vmatpush1.bf16.msra.mxu0 0
        %567 = vmatprep.subr.bf16.mxu0 0
        %568 = vmatpush1.bf16.msra.mxu0 0
        %569 = vmatprep.subr.bf16.mxu0 0
        %570 = vmatpush1.bf16.msra.mxu0 0
        %571 = vmatprep.subr.bf16.mxu0 0
        %572 = vmatpush1.bf16.msra.mxu0 0
        %573 = vmatprep.subr.bf16.mxu0 0
        %574 = vmatpush1.bf16.msra.mxu0 0
        %575 = vmatprep.subr.bf16.mxu0 0
        %576 = vmatpush1.bf16.msra.mxu0 0
        %577 = vmatprep.subr.bf16.mxu0 0
        %578 = vmatpush1.bf16.msra.mxu0 0
        %579 = vmatprep.subr.bf16.mxu0 0
        %580 = vmatpush1.bf16.msra.mxu0 0
        %581 = vmatprep.subr.bf16.mxu0 0
        %582 = vmatpush1.bf16.msra.mxu0 0
        %583 = vmatprep.subr.bf16.mxu0 0
        %584 = vmatpush1.bf16.msra.mxu0 0
        %585 = vmatprep.subr.bf16.mxu0 0
        %586 = vmatpush1.bf16.msra.mxu0 0
        %587 = vmatprep.mubr.bf16.mxu0 0
        %588 = vmatmul.mubr.bf16.gmra.mrb[0].mxu0 %v549
        %v589 = vpop.f32.mrb[0].mxu0
        %v590 = vadd.f32 0.0, %v589
        %v591 = vpop.f32.mrb[0].mxu0
        %v592 = vpop.f32.mrb[0].mxu0
        %v593 = vpop.f32.mrb[0].mxu0
        %594 = vdwg.mxu0
        %595 = vrot.lane.b32.xlu0 %v480, 120
        %v596 = vpop.permute.xlu0 %595
        %597 = vrot.lane.b32.xlu0 %v480, 88
        %v598 = vpop.permute.xlu0 %597
        %v600 = vsel %vm484, %v596, 0
        %v603 = vsel %vm484, %v598, 0
        %605 = vmatprep.subr.bf16.mxu0 0
        %606 = vmatpush1.bf16.xpose.msra.mxu0 %v603
        %607 = vmatprep.subr.bf16.mxu0 0
        %608 = vmatpush1.bf16.xpose.msra.mxu0 0
        %609 = vmatprep.subr.bf16.mxu0 0
        %610 = vmatpush1.bf16.xpose.msra.mxu0 0
        %611 = vmatprep.subr.bf16.mxu0 0
        %612 = vmatpush1.bf16.xpose.msra.mxu0 0
        %613 = vmatprep.subr.bf16.mxu0 0
        %614 = vmatpush1.bf16.xpose.msra.mxu0 0
        %615 = vmatprep.subr.bf16.mxu0 0
        %616 = vmatpush1.bf16.xpose.msra.mxu0 0
        %617 = vmatprep.subr.bf16.mxu0 0
        %618 = vmatpush1.bf16.xpose.msra.mxu0 0
        %619 = vmatprep.subr.bf16.mxu0 0
        %620 = vmatpush1.bf16.xpose.msra.mxu0 0
        %621 = vmatprep.subr.bf16.mxu0 0
        %622 = vmatpush1.bf16.xpose.msra.mxu0 0
        %623 = vmatprep.subr.bf16.mxu0 0
        %624 = vmatpush1.bf16.xpose.msra.mxu0 0
        %625 = vmatprep.subr.bf16.mxu0 0
        %626 = vmatpush1.bf16.xpose.msra.mxu0 0
        %627 = vmatprep.subr.bf16.mxu0 0
        %628 = vmatpush1.bf16.xpose.msra.mxu0 0
        %629 = vmatprep.subr.bf16.mxu0 0
        %630 = vmatpush1.bf16.xpose.msra.mxu0 0
        %631 = vmatprep.subr.bf16.mxu0 0
        %632 = vmatpush1.bf16.xpose.msra.mxu0 0
        %633 = vmatprep.subr.bf16.mxu0 0
        %634 = vmatpush1.bf16.xpose.msra.mxu0 0
        %635 = vmatprep.subr.bf16.mxu0 0
        %636 = vmatpush1.bf16.xpose.msra.mxu0 0
        %637 = vmatprep.mubr.bf16.mxu0 0
        %638 = vmatmul.mubr.bf16.gmra.mrb[0].mxu0 %v600
        %v639 = vpop.f32.mrb[0].mxu0
        %v640 = vadd.f32 0.0, %v639
        %v641 = vpop.f32.mrb[0].mxu0
        %v642 = vpop.f32.mrb[0].mxu0
        %v643 = vpop.f32.mrb[0].mxu0
        %644 = vdwg.mxu0
        %v645 = vmul.f32 %v640, 0.35355338
        %v646 = vsel %vm532, -1e+09, %v645
        %v647 = vsel %vm484, %v646, -inf
        %648 = vmax.xlane.f32.xlu0 %v647
        %v649 = vpop.xlane.xlu0 %648
        %v650 = vsub.f32 %v646, %v649
        %v651 = vmul.f32 %v650, 1.442695
        %v652 = vpow.pop %v651
        %v653 = vsel %vm484, %v652, 0.0
        %654 = vadd.xlane.f32.xlu0 %v653
        %v655 = vpop.xlane.xlu0 %654
        %v656 = vrcp.pop %v655
        %v657 = vmul.f32 %v652, %v656
        %v658 = vpack.c.bf16 %v657, %v657
        %659 = vrot.lane.b32.xlu0 %v480, 56
        %v660 = vpop.permute.xlu0 %659
        %v662 = vsel %vm484, %v658, 0
        %v665 = vsel %vm551, %v660, 0
        %667 = vmatprep.subr.bf16.mxu0 0
        %668 = vmatpush1.bf16.msra.mxu0 %v665
        %669 = vmatprep.subr.bf16.mxu0 0
        %670 = vmatpush1.bf16.msra.mxu0 0
        %671 = vmatprep.subr.bf16.mxu0 0
        %672 = vmatpush1.bf16.msra.mxu0 0
        %673 = vmatprep.subr.bf16.mxu0 0
        %674 = vmatpush1.bf16.msra.mxu0 0
        %675 = vmatprep.subr.bf16.mxu0 0
        %676 = vmatpush1.bf16.msra.mxu0 0
        %677 = vmatprep.subr.bf16.mxu0 0
        %678 = vmatpush1.bf16.msra.mxu0 0
        %679 = vmatprep.subr.bf16.mxu0 0
        %680 = vmatpush1.bf16.msra.mxu0 0
        %681 = vmatprep.subr.bf16.mxu0 0
        %682 = vmatpush1.bf16.msra.mxu0 0
        %683 = vmatprep.subr.bf16.mxu0 0
        %684 = vmatpush1.bf16.msra.mxu0 0
        %685 = vmatprep.subr.bf16.mxu0 0
        %686 = vmatpush1.bf16.msra.mxu0 0
        %687 = vmatprep.subr.bf16.mxu0 0
        %688 = vmatpush1.bf16.msra.mxu0 0
        %689 = vmatprep.subr.bf16.mxu0 0
        %690 = vmatpush1.bf16.msra.mxu0 0
        %691 = vmatprep.subr.bf16.mxu0 0
        %692 = vmatpush1.bf16.msra.mxu0 0
        %693 = vmatprep.subr.bf16.mxu0 0
        %694 = vmatpush1.bf16.msra.mxu0 0
        %695 = vmatprep.subr.bf16.mxu0 0
        %696 = vmatpush1.bf16.msra.mxu0 0
        %697 = vmatprep.subr.bf16.mxu0 0
        %698 = vmatpush1.bf16.msra.mxu0 0
        %699 = vmatprep.mubr.bf16.mxu0 0
        %700 = vmatmul.mubr.bf16.gmra.mrb[0].mxu0 %v662
        %v701 = vpop.f32.mrb[0].mxu0
        %v702 = vadd.f32 0.0, %v701
        %v703 = vpop.f32.mrb[0].mxu0
        %v704 = vpop.f32.mrb[0].mxu0
        %v705 = vpop.f32.mrb[0].mxu0
        %706 = vdwg.mxu0
        %707 = vrot.lane.b32.xlu0 %v480, 112
        %v708 = vpop.permute.xlu0 %707
        %709 = vrot.lane.b32.xlu0 %v480, 80
        %v710 = vpop.permute.xlu0 %709
        %v712 = vsel %vm484, %v708, 0
        %v715 = vsel %vm484, %v710, 0
        %717 = vmatprep.subr.bf16.mxu0 0
        %718 = vmatpush1.bf16.xpose.msra.mxu0 %v715
        %719 = vmatprep.subr.bf16.mxu0 0
        %720 = vmatpush1.bf16.xpose.msra.mxu0 0
        %721 = vmatprep.subr.bf16.mxu0 0
        %722 = vmatpush1.bf16.xpose.msra.mxu0 0
        %723 = vmatprep.subr.bf16.mxu0 0
        %724 = vmatpush1.bf16.xpose.msra.mxu0 0
        %725 = vmatprep.subr.bf16.mxu0 0
        %726 = vmatpush1.bf16.xpose.msra.mxu0 0
        %727 = vmatprep.subr.bf16.mxu0 0
        %728 = vmatpush1.bf16.xpose.msra.mxu0 0
        %729 = vmatprep.subr.bf16.mxu0 0
        %730 = vmatpush1.bf16.xpose.msra.mxu0 0
        %731 = vmatprep.subr.bf16.mxu0 0
        %732 = vmatpush1.bf16.xpose.msra.mxu0 0
        %733 = vmatprep.subr.bf16.mxu0 0
        %734 = vmatpush1.bf16.xpose.msra.mxu0 0
        %735 = vmatprep.subr.bf16.mxu0 0
        %736 = vmatpush1.bf16.xpose.msra.mxu0 0
        %737 = vmatprep.subr.bf16.mxu0 0
        %738 = vmatpush1.bf16.xpose.msra.mxu0 0
        %739 = vmatprep.subr.bf16.mxu0 0
        %740 = vmatpush1.bf16.xpose.msra.mxu0 0
        %741 = vmatprep.subr.bf16.mxu0 0
        %742 = vmatpush1.bf16.xpose.msra.mxu0 0
        %743 = vmatprep.subr.bf16.mxu0 0
        %744 = vmatpush1.bf16.xpose.msra.mxu0 0
        %745 = vmatprep.subr.bf16.mxu0 0
        %746 = vmatpush1.bf16.xpose.msra.mxu0 0
        %747 = vmatprep.subr.bf16.mxu0 0
        %748 = vmatpush1.bf16.xpose.msra.mxu0 0
        %749 = vmatprep.mubr.bf16.mxu0 0
        %750 = vmatmul.mubr.bf16.gmra.mrb[0].mxu0 %v712
        %v751 = vpop.f32.mrb[0].mxu0
        %v752 = vadd.f32 0.0, %v751
        %v753 = vpop.f32.mrb[0].mxu0
        %v754 = vpop.f32.mrb[0].mxu0
        %v755 = vpop.f32.mrb[0].mxu0
        %756 = vdwg.mxu0
        %v757 = vmul.f32 %v752, 0.35355338
        %v758 = vsel %vm532, -1e+09, %v757
        %v759 = vsel %vm484, %v758, -inf
        %760 = vmax.xlane.f32.xlu0 %v759
        %v761 = vpop.xlane.xlu0 %760
        %v762 = vsub.f32 %v758, %v761
        %v763 = vmul.f32 %v762, 1.442695
        %v764 = vpow.pop %v763
        %v765 = vsel %vm484, %v764, 0.0
        %766 = vadd.xlane.f32.xlu0 %v765
        %v767 = vpop.xlane.xlu0 %766
        %v768 = vrcp.pop %v767
        %v769 = vmul.f32 %v764, %v768
        %v770 = vpack.c.bf16 %v769, %v769
        %771 = vrot.lane.b32.xlu0 %v480, 48
        %v772 = vpop.permute.xlu0 %771
        %v774 = vsel %vm484, %v770, 0
        %v777 = vsel %vm551, %v772, 0
        %779 = vmatprep.subr.bf16.mxu0 0
        %780 = vmatpush1.bf16.msra.mxu0 %v777
        %781 = vmatprep.subr.bf16.mxu0 0
        %782 = vmatpush1.bf16.msra.mxu0 0
        %783 = vmatprep.subr.bf16.mxu0 0
        %784 = vmatpush1.bf16.msra.mxu0 0
        %785 = vmatprep.subr.bf16.mxu0 0
        %786 = vmatpush1.bf16.msra.mxu0 0
        %787 = vmatprep.subr.bf16.mxu0 0
        %788 = vmatpush1.bf16.msra.mxu0 0
        %789 = vmatprep.subr.bf16.mxu0 0
        %790 = vmatpush1.bf16.msra.mxu0 0
        %791 = vmatprep.subr.bf16.mxu0 0
        %792 = vmatpush1.bf16.msra.mxu0 0
        %793 = vmatprep.subr.bf16.mxu0 0
        %794 = vmatpush1.bf16.msra.mxu0 0
        %795 = vmatprep.subr.bf16.mxu0 0
        %796 = vmatpush1.bf16.msra.mxu0 0
        %797 = vmatprep.subr.bf16.mxu0 0
        %798 = vmatpush1.bf16.msra.mxu0 0
        %799 = vmatprep.subr.bf16.mxu0 0
        %800 = vmatpush1.bf16.msra.mxu0 0
        %801 = vmatprep.subr.bf16.mxu0 0
        %802 = vmatpush1.bf16.msra.mxu0 0
        %803 = vmatprep.subr.bf16.mxu0 0
        %804 = vmatpush1.bf16.msra.mxu0 0
        %805 = vmatprep.subr.bf16.mxu0 0
        %806 = vmatpush1.bf16.msra.mxu0 0
        %807 = vmatprep.subr.bf16.mxu0 0
        %808 = vmatpush1.bf16.msra.mxu0 0
        %809 = vmatprep.subr.bf16.mxu0 0
        %810 = vmatpush1.bf16.msra.mxu0 0
        %811 = vmatprep.mubr.bf16.mxu0 0
        %812 = vmatmul.mubr.bf16.gmra.mrb[0].mxu0 %v774
        %v813 = vpop.f32.mrb[0].mxu0
        %v814 = vadd.f32 0.0, %v813
        %v815 = vpop.f32.mrb[0].mxu0
        %v816 = vpop.f32.mrb[0].mxu0
        %v817 = vpop.f32.mrb[0].mxu0
        %818 = vdwg.mxu0
        %819 = vrot.lane.b32.xlu0 %v480, 104
        %v820 = vpop.permute.xlu0 %819
        %821 = vrot.lane.b32.xlu0 %v480, 72
        %v822 = vpop.permute.xlu0 %821
        %v824 = vsel %vm484, %v820, 0
        %v827 = vsel %vm484, %v822, 0
        %829 = vmatprep.subr.bf16.mxu0 0
        %830 = vmatpush1.bf16.xpose.msra.mxu0 %v827
        %831 = vmatprep.subr.bf16.mxu0 0
        %832 = vmatpush1.bf16.xpose.msra.mxu0 0
        %833 = vmatprep.subr.bf16.mxu0 0
        %834 = vmatpush1.bf16.xpose.msra.mxu0 0
        %835 = vmatprep.subr.bf16.mxu0 0
        %836 = vmatpush1.bf16.xpose.msra.mxu0 0
        %837 = vmatprep.subr.bf16.mxu0 0
        %838 = vmatpush1.bf16.xpose.msra.mxu0 0
        %839 = vmatprep.subr.bf16.mxu0 0
        %840 = vmatpush1.bf16.xpose.msra.mxu0 0
        %841 = vmatprep.subr.bf16.mxu0 0
        %842 = vmatpush1.bf16.xpose.msra.mxu0 0
        %843 = vmatprep.subr.bf16.mxu0 0
        %844 = vmatpush1.bf16.xpose.msra.mxu0 0
        %845 = vmatprep.subr.bf16.mxu0 0
        %846 = vmatpush1.bf16.xpose.msra.mxu0 0
        %847 = vmatprep.subr.bf16.mxu0 0
        %848 = vmatpush1.bf16.xpose.msra.mxu0 0
        %849 = vmatprep.subr.bf16.mxu0 0
        %850 = vmatpush1.bf16.xpose.msra.mxu0 0
        %851 = vmatprep.subr.bf16.mxu0 0
        %852 = vmatpush1.bf16.xpose.msra.mxu0 0
        %853 = vmatprep.subr.bf16.mxu0 0
        %854 = vmatpush1.bf16.xpose.msra.mxu0 0
        %855 = vmatprep.subr.bf16.mxu0 0
        %856 = vmatpush1.bf16.xpose.msra.mxu0 0
        %857 = vmatprep.subr.bf16.mxu0 0
        %858 = vmatpush1.bf16.xpose.msra.mxu0 0
        %859 = vmatprep.subr.bf16.mxu0 0
        %860 = vmatpush1.bf16.xpose.msra.mxu0 0
        %861 = vmatprep.mubr.bf16.mxu0 0
        %862 = vmatmul.mubr.bf16.gmra.mrb[0].mxu0 %v824
        %v863 = vpop.f32.mrb[0].mxu0
        %v864 = vadd.f32 0.0, %v863
        %v865 = vpop.f32.mrb[0].mxu0
        %v866 = vpop.f32.mrb[0].mxu0
        %v867 = vpop.f32.mrb[0].mxu0
        %868 = vdwg.mxu0
        %v869 = vmul.f32 %v864, 0.35355338
        %v870 = vsel %vm532, -1e+09, %v869
        %v871 = vsel %vm484, %v870, -inf
        %872 = vmax.xlane.f32.xlu0 %v871
        %v873 = vpop.xlane.xlu0 %872
        %v874 = vsub.f32 %v870, %v873
        %v875 = vmul.f32 %v874, 1.442695
        %v876 = vpow.pop %v875
        %v877 = vsel %vm484, %v876, 0.0
        %878 = vadd.xlane.f32.xlu0 %v877
        %v879 = vpop.xlane.xlu0 %878
        %v880 = vrcp.pop %v879
        %v881 = vmul.f32 %v876, %v880
        %v882 = vpack.c.bf16 %v881, %v881
        %883 = vrot.lane.b32.xlu0 %v480, 40
        %v884 = vpop.permute.xlu0 %883
        %v886 = vsel %vm484, %v882, 0
        %v889 = vsel %vm551, %v884, 0
        %891 = vmatprep.subr.bf16.mxu0 0
        %892 = vmatpush1.bf16.msra.mxu0 %v889
        %893 = vmatprep.subr.bf16.mxu0 0
        %894 = vmatpush1.bf16.msra.mxu0 0
        %895 = vmatprep.subr.bf16.mxu0 0
        %896 = vmatpush1.bf16.msra.mxu0 0
        %897 = vmatprep.subr.bf16.mxu0 0
        %898 = vmatpush1.bf16.msra.mxu0 0
        %899 = vmatprep.subr.bf16.mxu0 0
        %900 = vmatpush1.bf16.msra.mxu0 0
        %901 = vmatprep.subr.bf16.mxu0 0
        %902 = vmatpush1.bf16.msra.mxu0 0
        %903 = vmatprep.subr.bf16.mxu0 0
        %904 = vmatpush1.bf16.msra.mxu0 0
        %905 = vmatprep.subr.bf16.mxu0 0
        %906 = vmatpush1.bf16.msra.mxu0 0
        %907 = vmatprep.subr.bf16.mxu0 0
        %908 = vmatpush1.bf16.msra.mxu0 0
        %909 = vmatprep.subr.bf16.mxu0 0
        %910 = vmatpush1.bf16.msra.mxu0 0
        %911 = vmatprep.subr.bf16.mxu0 0
        %912 = vmatpush1.bf16.msra.mxu0 0
        %913 = vmatprep.subr.bf16.mxu0 0
        %914 = vmatpush1.bf16.msra.mxu0 0
        %915 = vmatprep.subr.bf16.mxu0 0
        %916 = vmatpush1.bf16.msra.mxu0 0
        %917 = vmatprep.subr.bf16.mxu0 0
        %918 = vmatpush1.bf16.msra.mxu0 0
        %919 = vmatprep.subr.bf16.mxu0 0
        %920 = vmatpush1.bf16.msra.mxu0 0
        %921 = vmatprep.subr.bf16.mxu0 0
        %922 = vmatpush1.bf16.msra.mxu0 0
        %923 = vmatprep.mubr.bf16.mxu0 0
        %924 = vmatmul.mubr.bf16.gmra.mrb[0].mxu0 %v886
        %v925 = vpop.f32.mrb[0].mxu0
        %v926 = vadd.f32 0.0, %v925
        %v927 = vpop.f32.mrb[0].mxu0
        %v928 = vpop.f32.mrb[0].mxu0
        %v929 = vpop.f32.mrb[0].mxu0
        %930 = vdwg.mxu0
        %932 = vrot.lane.b32.xlu0 %v702, 8
        %v933 = vpop.permute.xlu0 %932
        %936 = vrot.lane.b32.xlu0 %v814, 16
        %v937 = vpop.permute.xlu0 %936
        %940 = vrot.lane.b32.xlu0 %v926, 24
        %v941 = vpop.permute.xlu0 %940
        %v943 = vsel %vm484, %v590, %v933
        %vm944 = vcmask 130048
        %v945 = vsel %vm944, %v943, %v937
        %vm946 = vcmask 195584
        %v947 = vsel %vm946, %v945, %v941
        %v948 = vpack.c.bf16 %v947, %v947
        %v949 = vld [vmem:[%s6] sm:$0xf]
        %v950 = vld [vmem:[%s6 + $0x4] sm:$0xf]
        %v951 = vld [vmem:[%s6 + $0x8] sm:$0xf]
        %v952 = vld [vmem:[%s6 + $0xc] sm:$0xf]
        %v953 = vld [vmem:[%s7] sm:$0x1]
        %v955 = vlaneseq
        %v956 = vshrl.u32 %v955, 7
        %v957 = vsub.s32 0, %v956
        %v958 = vrot.slane %v953, %v957
        %v964 = vunpack.c.l.b16 %v949
        %v965 = vunpack.c.l.b16 %v950
        %v966 = vunpack.c.l.b16 %v951
        %v967 = vunpack.c.l.b16 %v952
        %v968 = vpack.c.b16 %v965, %v964
        %v969 = vpack.c.b16 %v967, %v966
        %v973 = vsel %vm376, %v948, 0
        %975 = vmatprep.subr.bf16.mxu0 0
        %976 = vmatpush1.bf16.msra.mxu0 %v968
        %977 = vmatprep.subr.bf16.mxu0 0
        %978 = vmatpush1.bf16.msra.mxu0 %v969
        %979 = vmatprep.subr.bf16.mxu0 0
        %980 = vmatpush1.bf16.msra.mxu0 0
        %981 = vmatprep.subr.bf16.mxu0 0
        %982 = vmatpush1.bf16.msra.mxu0 0
        %983 = vmatprep.subr.bf16.mxu0 0
        %984 = vmatpush1.bf16.msra.mxu0 0
        %985 = vmatprep.subr.bf16.mxu0 0
        %986 = vmatpush1.bf16.msra.mxu0 0
        %987 = vmatprep.subr.bf16.mxu0 0
        %988 = vmatpush1.bf16.msra.mxu0 0
        %989 = vmatprep.subr.bf16.mxu0 0
        %990 = vmatpush1.bf16.msra.mxu0 0
        %991 = vmatprep.subr.bf16.mxu0 0
        %992 = vmatpush1.bf16.msra.mxu0 0
        %993 = vmatprep.subr.bf16.mxu0 0
        %994 = vmatpush1.bf16.msra.mxu0 0
        %995 = vmatprep.subr.bf16.mxu0 0
        %996 = vmatpush1.bf16.msra.mxu0 0
        %997 = vmatprep.subr.bf16.mxu0 0
        %998 = vmatpush1.bf16.msra.mxu0 0
        %999 = vmatprep.subr.bf16.mxu0 0
        %1000 = vmatpush1.bf16.msra.mxu0 0
        %1001 = vmatprep.subr.bf16.mxu0 0
        %1002 = vmatpush1.bf16.msra.mxu0 0
        %1003 = vmatprep.subr.bf16.mxu0 0
        %1004 = vmatpush1.bf16.msra.mxu0 0
        %1005 = vmatprep.subr.bf16.mxu0 0
        %1006 = vmatpush1.bf16.msra.mxu0 0
        %1007 = vmatprep.mubr.bf16.mxu0 0
        %1008 = vmatmul.mubr.bf16.gmra.mrb[0].mxu0 %v973
        %v1009 = vpop.f32.mrb[0].mxu0
        %v1010 = vadd.f32 %v958, %v1009
        %v1011 = vpop.f32.mrb[0].mxu0
        %v1012 = vpop.f32.mrb[0].mxu0
        %v1013 = vpop.f32.mrb[0].mxu0
        %1014 = vdwg.mxu0
        %v1015 = vadd.f32 %v373, %v1010
        %1016 = vst.msk [vmem:[%s371] sm:$0xff] %vm376, %v1015
        %s1017 = sand.u32 %s214, 1
        %s1018 = scalar_lea.sflag [#allocation4], %s1017
        %s1019 = sand.u32 %s214, 1
        %s1020 = smul.addr %s1019, 8
        %s1021 = scalar_lea.vmem [#allocation8], %s1020
        // Predicated region
        $region65: #{tpu_custom_call.1} parent=51 // pred_check
          %p1022 = pneg %p224
        $region66: #{tpu_custom_call.1} parent=51 // pred_check_branch
          %1024 = sbr.rel (%p1022) target = $region68
        $region67: #{tpu_custom_call.1} parent=51 // pred_region
          %s1026 = ssub.s32 128, 128
          %1027 = vsyncadd %s1018, %s1026
          %s1028 = smul.addr %s28, 128
          %s1029 = scalar_lea.hbm %s8, %s1028
          %s1031 = sshll.u32 %s1021, 4
          %s1032 = int_to_ptr.vmem [resolvable:$true] %s1031
          %1034 = dma.vmem_to_hbm [thread:$0]  %s1032, 128, %s1029, %s1018
        $region68: #{tpu_custom_call.1} parent=51 // pred_fallthru
          _
      $region52: #{tpu_custom_call.1} parent=5 // pred_fallthru
        _
      %p1035 = scmp.le.s32.totalorder 2, %s23
      // Predicated region
      $region69: #{tpu_custom_call.1} parent=5 // pred_check
        %p1036 = pneg %p1035
      $region70: #{tpu_custom_call.1} parent=5 // pred_check_branch
        %1038 = sbr.rel (%p1036) target = $region72
      $region71: #{tpu_custom_call.1} parent=5 // pred_region
        %s1039 = ssub.s32 %s23, 2
        // Predicated region
        $region73: #{tpu_custom_call.1} parent=71 // pred_check
          %p1040 = pneg %p230
        $region74: #{tpu_custom_call.1} parent=71 // pred_check_branch
          %1042 = sbr.rel (%p1040) target = $region76
        $region75: #{tpu_custom_call.1} parent=71 // pred_region
          %s1043 = sand.u32 %s215, 1
          %s1044 = scalar_lea.sflag [#allocation4], %s1043
          %s1045 = sand.u32 %s215, 1
          %s1046 = smul.addr %s1045, 8
          %s1047 = scalar_lea.vmem [#allocation8], %s1046
          %1048 = dma.done %s1044, 128
        $region76: #{tpu_custom_call.1} parent=71 // pred_fallthru
          _
      $region72: #{tpu_custom_call.1} parent=5 // pred_fallthru
        _
    $region6: #{tpu_custom_call.1} parent=1 // loop_footer
      %s27 = sadd.s32 1, %s23
    $region7: #{tpu_custom_call.1} parent=1 // loop_footer_branch
      %22 = sbr.rel target = $region3
    $region8: #{tpu_custom_call.1} parent=1 // loop_exit
      _
    %1049 = vsyncpa [#allocation3], 1
    %s1050 = scalar_lea.sflag [#allocation3], 1
    %1051 = vsyncpa %s1050, 1
    %1052 = vsyncpa [#allocation6], 1
    %s1053 = scalar_lea.sflag [#allocation6], 1
    %1054 = vsyncpa %s1053, 1
    %1055 = vsyncpa [#allocation4], 1
    %s1056 = scalar_lea.sflag [#allocation4], 1
    %1057 = vsyncpa %s1056, 1

</llo_original>
